<compile_context>
chip_gen: v7x
topology: tpu7x:2x2x1
jax: 0.10.0
libtpu: 0.0.40
codegen_flags: <defaults>
</compile_context>

<pallas_src>
import functools

import jax
import jax.numpy as jnp
from jax.experimental import pallas as pl
from jax.experimental.pallas import tpu as pltpu


def _rup(v, m):
    return ((v + m - 1) // m) * m


@functools.lru_cache(maxsize=None)
def _roll_matches_jnp_roll() -> bool:
    """Probe (once, cached) pltpu.roll's rotation direction.

    jnp.roll convention: result[i] = x[(i - shift) mod n].  The conv needs a *left* shift by k
    (result[t] = x[t + k]); that is shift = n - k under the jnp convention and shift = k under
    the opposite one.  A tiny compiled probe pins the convention so the convolution can never
    be silently direction-flipped.  (Call outside of jit; cached after first use.)
    """
    def probe(x_ref, o_ref):
        o_ref[...] = pltpu.roll(x_ref[...], shift=1, axis=1)

    x = jnp.broadcast_to(jnp.arange(128, dtype=jnp.float32)[None, :], (8, 128))
    out = pl.pallas_call(
        probe, out_shape=jax.ShapeDtypeStruct((8, 128), jnp.float32))(x)
    return bool(out[0, 0] == 127.0)


def _roll_left(x, k, axis_len, roll_like_jnp):
    """Rotate x left by k along its last (lane) axis: result[..., t] = x[..., (t+k) % n]."""
    if k == 0:
        return x
    shift = (axis_len - k) if roll_like_jnp else k
    return pltpu.roll(x, shift=shift, axis=x.ndim - 1)


def _vmem_capacity_bytes() -> int:
    """Physical VMEM of the current chip; conservative (v7x-sized) fallback if the query fails."""
    try:
        cap = int(pltpu.get_tpu_info().vmem_capacity_bytes)
        if cap > 0:
            return cap
    except Exception:
        pass
    return 64 * 1024 * 1024


def _plan_blocks(n, c_in, c_out, k, t_pad, use_bf16, budget_bytes):
    """Pick batch segments per grid step (nb), grid length, padded N and a per-step VMEM estimate.

    The per-lane-column cost counts the DMA'd blocks (double-buffered) AND the in-kernel
    intermediates: K rolled copies of x + the concatenated im2col stack (f32), the optional
    bf16 copy of the stack, and the f32 accumulator.
    """
    c_in8, c_out8 = _rup(c_in, 8), _rup(c_out, 8)
    kc8 = _rup(k * c_in, 8)
    per_col = (2 * c_in8 * 4          # x block, double-buffered
               + 2 * c_out8 * 4       # out block, double-buffered
               + 2 * kc8 * 4          # K rolled copies + concatenated im2col (f32)
               + c_out8 * 4)          # f32 accumulator / bias-added result
    if use_bf16:
        per_col += kc8 * 2            # bf16 copy of the im2col stack
    w_bytes = c_out8 * _rup(k * c_in, 128) * 4 * 2   # resident weight (generous: f32, 2 bufs)

    avail = max(budget_bytes - w_bytes, per_col * t_pad)
    nb_max = max(1, avail // (per_col * t_pad))

    # Keep >= 2 grid steps whenever N >= 2 so both v7x TensorCores get work; pad N instead of
    # requiring nb | N (no collapse to nb=1 on awkward batch sizes).
    min_steps = 2 if n >= 2 else 1
    grid_steps = max(min_steps, -(-n // nb_max))
    nb = -(-n // grid_steps)
    n_pad = grid_steps * nb
    per_step_bytes = per_col * nb * t_pad + w_bytes
    return nb, grid_steps, n_pad, per_step_bytes


def _make_conv1d_kernel(c_in, c_out, kernel_size, use_mxu, use_bf16, roll_like_jnp):
    def conv1d_kernel(x_ref, w_ref, b_ref, o_ref):
        # x_ref: (C_in, W)  with W = nb * T_pad (nb whole batch segments fused on the lane axis)
        # w_ref: (C_out, K*C_in)   b_ref: (C_out, 1)   o_ref: (C_out, W)
        width = x_ref.shape[1]
        xw = x_ref[...]
        # K lane-rotated copies of the fused slab; wrap-around (incl. across batch-segment
        # boundaries) only affects local output columns >= T_out, sliced off in the wrapper.
        shifted = [_roll_left(xw, kk, width, roll_like_jnp) for kk in range(kernel_size)]
        if use_mxu:
            if use_bf16:
                shifted = [s.astype(jnp.bfloat16) for s in shifted]
            # im2col stack (K*C_in, W); row kk*C_in + c holds x[c, t + kk].
            x_col = (jnp.concatenate(shifted, axis=0)
                     if kernel_size > 1 else shifted[0])
            # ONE MXU push per grid step, contraction depth K*C_in, f32 accumulation.
            acc = jnp.dot(w_ref[...], x_col, preferred_element_type=jnp.float32)
        else:
            # Tiny-channel path: C_in*K broadcast FMAs on the VPU over the wide fused slab.
            # An (8x4)@(4xW) matmul would leave the MXU >99% idle and be push/pop bound.
            w = w_ref[...]
            acc = jnp.zeros((c_out, width), jnp.float32)
            for kk in range(kernel_size):
                xk = shifted[kk]
                for c in range(c_in):
                    col = kk * c_in + c
                    acc = acc + w[:, col:col + 1] * xk[c:c + 1, :]
        o_ref[...] = (acc + b_ref[...]).astype(o_ref.dtype)

    return conv1d_kernel


def norm_conv1d(x, weight, bias, *, bf16_matmul=True):
    """Forward of NormConv1d with norm='none' (Conv1d + Identity), stride=1, no padding.

    bf16_matmul=True (default) uses bf16 MXU operands with f32 accumulation on the matmul path
    (accuracy ~bf16 mantissa precision); pass bf16_matmul=False for full-f32 numerics.
    """
    n, c_in, t = x.shape
    c_out, c_in_w, k = weight.shape
    assert c_in_w == c_in and t >= k
    t_out = t - k + 1

    # Lane-dense per-batch time segment: pad T up to a multiple of 128.
    t_pad = _rup(t, 128)

    use_mxu = (min(c_in, c_out) >= 32) or (c_in * k > 128)
    use_bf16 = bool(bf16_matmul and use_mxu)

    vmem_cap = _vmem_capacity_bytes()
    nb, grid_steps, n_pad, per_step_bytes = _plan_blocks(
        n, c_in, c_out, k, t_pad, use_bf16, budget_bytes=vmem_cap // 3)
    width = nb * t_pad

    # Fuse batch onto the lane axis: (N_pad, C_in, T_pad) -> (C_in, N_pad*T_pad).
    x_p = jnp.pad(x, ((0, n_pad - n), (0, 0), (0, t_pad - t)))
    x_f = jnp.transpose(x_p, (1, 0, 2)).reshape(c_in, n_pad * t_pad)

    # Lane-friendly 2-D weight: (C_out, K*C_in); column kk*C_in + c == weight[:, c, kk].
    w2 = jnp.transpose(weight, (0, 2, 1)).reshape(c_out, k * c_in)
    if use_bf16:
        w2 = w2.astype(jnp.bfloat16)       # resident VMEM copy already half-size
    bias2d = bias.reshape(c_out, 1).astype(jnp.float32)

    roll_like_jnp = _roll_matches_jnp_roll() if k > 1 else True
    kernel = _make_conv1d_kernel(c_in, c_out, k, use_mxu, use_bf16, roll_like_jnp)

    vmem_limit = int(min(vmem_cap * 3 // 4, max(32 * 1024 * 1024, 2 * per_step_bytes)))

    out_f = pl.pallas_call(
        kernel,
        out_shape=jax.ShapeDtypeStruct((c_out, n_pad * t_pad), x.dtype),
        grid_spec=pltpu.PrefetchScalarGridSpec(
            num_scalar_prefetch=0,
            grid=(grid_steps,),
            in_specs=[
                pl.BlockSpec((c_in, width), lambda i: (0, i)),
                pl.BlockSpec((c_out, k * c_in), lambda i: (0, 0)),
                pl.BlockSpec((c_out, 1), lambda i: (0, 0)),
            ],
            out_specs=pl.BlockSpec((c_out, width), lambda i: (0, i)),
        ),
        compiler_params=pltpu.CompilerParams(
            dimension_semantics=("parallel",),
            vmem_limit_bytes=vmem_limit),
    )(x_f, w2, bias2d)

    # Un-fuse and drop time/batch padding: (C_out, N_pad*T_pad) -> (N, C_out, T_out).
    out = out_f.reshape(c_out, n_pad, t_pad).transpose(1, 0, 2)
    return out[:n, :, :t_out]


if __name__ == "__main__":
    # Module config: NormConv1d(in_channels=4, out_channels=8, kernel_size=3), norm='none'.
    # Small demo -> exercises the VPU (tiny-channel) path.
    N, C_IN, C_OUT, K, T = 2, 4, 8, 3, 16

    key = jax.random.PRNGKey(0)
    kx, kw, kb = jax.random.split(key, 3)

    x = jax.random.normal(kx, (N, C_IN, T), dtype=jnp.float32)
    fan_in = C_IN * K
    bound = 1.0 / (fan_in ** 0.5)
    weight = jax.random.uniform(kw, (C_OUT, C_IN, K), minval=-bound, maxval=bound,
                                dtype=jnp.float32)
    bias = jax.random.uniform(kb, (C_OUT,), minval=-bound, maxval=bound,
                              dtype=jnp.float32)

    out = jax.block_until_ready(norm_conv1d(x, weight, bias))

    ref = jax.lax.conv_general_dilated(
        x, weight, window_strides=(1,), padding="VALID",
        dimension_numbers=("NCH", "OIH", "NCH"),
        precision=jax.lax.Precision.HIGHEST) + bias[None, :, None]
    assert out.shape == (N, C_OUT, T - K + 1)
    assert jnp.allclose(out, ref, atol=1e-4, rtol=1e-4)

    # Larger-channel, odd-batch check -> exercises the fused-batch single-matmul MXU path,
    # batch padding (N=3 -> grid=2, nb=2) and the bf16-default numerics.
    N2, C2_IN, C2_OUT, K2, T2 = 3, 64, 64, 5, 300
    kx2, kw2, kb2 = jax.random.split(jax.random.PRNGKey(1), 3)
    x2 = jax.random.normal(kx2, (N2, C2_IN, T2), dtype=jnp.float32)
    b2 = 1.0 / ((C2_IN * K2) ** 0.5)
    w2_ = jax.random.uniform(kw2, (C2_OUT, C2_IN, K2), minval=-b2, maxval=b2,
                             dtype=jnp.float32)
    bias2 = jax.random.uniform(kb2, (C2_OUT,), minval=-b2, maxval=b2,
                               dtype=jnp.float32)
    ref2 = jax.lax.conv_general_dilated(
        x2, w2_, window_strides=(1,), padding="VALID",
        dimension_numbers=("NCH", "OIH", "NCH"),
        precision=jax.lax.Precision.HIGHEST) + bias2[None, :, None]

    # Default: bf16 operands, f32 accumulation -> ~bf16-level accuracy (documented).
    out2 = jax.block_until_ready(norm_conv1d(x2, w2_, bias2))
    assert out2.shape == (N2, C2_OUT, T2 - K2 + 1)
    assert jnp.allclose(out2, ref2, atol=5e-2, rtol=5e-2)

    # Full-f32 MXU path (f32 matmul lowers to multi-pass bf16 on the MXU -> loose-ish tol).
    out3 = jax.block_until_ready(norm_conv1d(x2, w2_, bias2, bf16_matmul=False))
    assert jnp.allclose(out3, ref2, atol=1e-2, rtol=1e-2)

    print("KERNEL_OK")
</pallas_src>

<mosaic_0001>
module attributes {stable_mosaic.version = 11 : i64} {
  func.func @probe(%arg0: memref<8x128xf32, #tpu.memory_space<vmem>>, %arg1: memref<8x128xf32, #tpu.memory_space<vmem>>) attributes {dimension_semantics = [], scalar_prefetch = 0 : i64, scratch_operands = 0 : i64, tpu.core_type = #tpu.core_type<tc>} {
    %c0 = arith.constant 0 : index
    %c0_0 = arith.constant 0 : index
    %0 = vector.load %arg0[%c0, %c0_0] : memref<8x128xf32, #tpu.memory_space<vmem>>, vector<8x128xf32>
    %c1_i32 = arith.constant 1 : i32
    %1 = tpu.dynamic_rotate %0 by %c1_i32 dim 1 : vector<8x128xf32>, i32 -> vector<8x128xf32>
    %c0_1 = arith.constant 0 : index
    %c0_2 = arith.constant 0 : index
    %2 = vector.load %arg1[%c0_1, %c0_2] : memref<8x128xf32, #tpu.memory_space<vmem>>, vector<8x128xf32>
    tpu.vector_store %arg1[%c0_1, %c0_2], %1 {strides = array<i32>} : memref<8x128xf32, #tpu.memory_space<vmem>>, vector<8x128xf32>,
    return
  }
}

</mosaic_0001>

<llo_original>
// kernel: tpu_custom_call.1
$region0: #{tpu_custom_call.1}
  #allocation0 [shape = 'u32[]', space=smem, size = 0x4, offset = 0x4, fixed_abs, tag = 'smem constant byte address 0x4 - core index']
  #allocation1 [shape = 'u32[144,128]{1,0:T(1,128)}', space=vmem, size = 0x12000, scoped, tag = 'internal scratch']
  %s0 = inlined_call_operand.hbm [shape: f32[8,128], index: 0, kind: input, shape index: {}]
  %s1 = inlined_call_operand.hbm [shape: f32[8,128], index: 1, kind: output, shape index: {}]
  %s2 = sld [smem:[#allocation0]]
  $region18: #{tpu_custom_call.1} parent=0
    _
  %s4 = ssub.s32 1, %s2
  %s5 = scalar_select 0, %s4, %s2
  $region1: #{tpu_custom_call.1} parent=0
    #allocation2 [shape = 'u8[4096]{0}', space=vmem, size = 0x1000, scoped, tag = 'input window, operand 0, single buffered']
    #allocation3 [shape = 's32[1]{0}', space=sflag, size = 0x4, scoped, tag = 'scoped memory for tpu_custom_call.1']
    #allocation4 [shape = 's32[1]{0}', space=sflag, size = 0x4, scoped, tag = 'scoped memory for tpu_custom_call.1']
    #allocation5 [shape = 'u8[4096]{0}', space=vmem, size = 0x1000, scoped, tag = 'output window, operand 0, single buffered']
    %6 = vsyncpa [#allocation3], 0
    %7 = vsyncpa [#allocation4], 0
    // Predicated region
    $region2: #{tpu_custom_call.1} parent=1 // pred_check
      _
    $region3: #{tpu_custom_call.1} parent=1 // pred_check_branch
      %9 = sbr.rel (0) target = $region5
    $region4: #{tpu_custom_call.1} parent=1 // pred_region
      %s11 = ssub.s32 128, 128
      %12 = vsyncadd [#allocation3], %s11
      %s14 = sshll.u32 [#allocation2], 4
      %s15 = int_to_ptr.vmem [resolvable:$true] %s14
      %17 = dma.hbm_to_vmem [thread:$0]  %s0, 128, %s15, [#allocation3]
    $region5: #{tpu_custom_call.1} parent=1 // pred_fallthru
      _
    // Predicated region
    $region6: #{tpu_custom_call.1} parent=1 // pred_check
      _
    $region7: #{tpu_custom_call.1} parent=1 // pred_check_branch
      %19 = sbr.rel (0) target = $region9
    $region8: #{tpu_custom_call.1} parent=1 // pred_region
      %20 = dma.done [#allocation3], 128
    $region9: #{tpu_custom_call.1} parent=1 // pred_fallthru
      _
    %v21 = vld [vmem:[#allocation2] sm:$0xff]
    %22 = vrot.lane.b32.xlu0 %v21, 1
    %v23 = vpop.permute.xlu0 %22
    %24 = vst [vmem:[#allocation5] sm:$0xff] %v23
    // Predicated region
    $region10: #{tpu_custom_call.1} parent=1 // pred_check
      _
    $region11: #{tpu_custom_call.1} parent=1 // pred_check_branch
      %26 = sbr.rel (0) target = $region13
    $region12: #{tpu_custom_call.1} parent=1 // pred_region
      %s28 = ssub.s32 128, 128
      %29 = vsyncadd [#allocation4], %s28
      %s31 = sshll.u32 [#allocation5], 4
      %s32 = int_to_ptr.vmem [resolvable:$true] %s31
      %34 = dma.vmem_to_hbm [thread:$0]  %s32, 128, %s1, [#allocation4]
    $region13: #{tpu_custom_call.1} parent=1 // pred_fallthru
      _
    // Predicated region
    $region14: #{tpu_custom_call.1} parent=1 // pred_check
      _
    $region15: #{tpu_custom_call.1} parent=1 // pred_check_branch
      %36 = sbr.rel (0) target = $region17
    $region16: #{tpu_custom_call.1} parent=1 // pred_region
      %37 = dma.done [#allocation4], 128
    $region17: #{tpu_custom_call.1} parent=1 // pred_fallthru
      _
    %38 = vsyncpa [#allocation3], 1
    %39 = vsyncpa [#allocation4], 1

</llo_original>
